<compile_context>
chip_gen: v6e
topology: v6e:2x2x1
jax: 0.10.0
libtpu: 0.0.40
codegen_flags: <defaults>
</compile_context>

<pallas_src>
import functools

import jax
import jax.numpy as jnp
from jax.experimental import pallas as pl
from jax.experimental.pallas import tpu as pltpu


_LANE = 128              # lane width: batch-tile granularity for multi-tile grids
_MAX_BATCH_TILE = 4096   # rows per grid step at very large B (tiny vs VMEM)


def _device_is_v5():
    """True on v5-generation TPUs (no bf16 VPU/EUP); conservative on failure."""
    try:
        return "v5" in jax.devices()[0].device_kind.lower()
    except Exception:  # no backend info -> be conservative (f32 everywhere)
        return True


def _critic_kernel(x_ref,              # (b_tile, obs_dim)  native-layout obs tile
                   w1t_ref, b1t_ref,   # (h1, obs_dim), (h1, 1)
                   w2t_ref, b2t_ref,   # (h2, h1),      (h2, 1)
                   w3r_ref, b3_ref,    # (1, h2) selected action row, (1, 1)
                   out_ref,            # (1, b_tile)  f32, lane-dense
                   *, act_dtype):
    cdt = w1t_ref.dtype                       # matmul-input dtype (f32 or bf16)
    x = x_ref[...].astype(cdt)                # (b_tile, obs_dim)
    # Layer 1: contract last dims of W1^T and the obs tile -> (h1, b_tile);
    # the layout flip (batch -> lanes) happens here, no HBM transpose needed.
    h = jax.lax.dot_general(
        w1t_ref[...], x,
        dimension_numbers=(((1,), (1,)), ((), ())),
        preferred_element_type=jnp.float32)
    h = jnp.tanh((h + b1t_ref[...]).astype(act_dtype))   # bf16 tanh on v6e/v7x
    # Layer 2: (h2, h1) @ (h1, b_tile) -> (h2, b_tile), f32 accumulation.
    h = jnp.dot(w2t_ref[...], h.astype(cdt), preferred_element_type=jnp.float32)
    h = jnp.tanh((h + b2t_ref[...]).astype(act_dtype))
    # Layer 3 (only the selected action column): (1, h2) @ (h2, b_tile).
    q = jnp.dot(w3r_ref[...], h.astype(cdt), preferred_element_type=jnp.float32)
    out_ref[...] = (q + b3_ref[...]).astype(out_ref.dtype)


def _pick_batch_tile(B):
    """Lane-aligned batch tile: single block for tiny B, otherwise >=2 balanced
    tiles (v7x has 2 TensorCores) each capped at _MAX_BATCH_TILE rows."""
    if B <= _LANE:
        return B
    n_tiles = max(2, pl.cdiv(B, _MAX_BATCH_TILE))
    return min(_MAX_BATCH_TILE, pl.cdiv(pl.cdiv(B, n_tiles), _LANE) * _LANE)


def mlp_discrete_critic_forward(obs, act_idx, params, *, compute_dtype=None):
    """obs: (B, obs_dim) f32; act_idx: scalar int action index (applied to the
    whole batch, matching torch `.select(-1, act)`); params: dict of (in,out)-
    layout weights/biases.  Returns (B,) f32 = Q(obs)[:, act_idx]."""
    w1, b1 = params["w1"], params["b1"]
    w2, b2 = params["w2"], params["b2"]
    w3, b3 = params["w3"], params["b3"]

    B, obs_dim = obs.shape
    h1, h2 = w1.shape[1], w2.shape[1]
    act_dim = w3.shape[1]

    is_v5 = _device_is_v5()
    if compute_dtype is None:
        # bf16 MXU inputs are the native path on v6e/v7x; v5e stays f32.
        compute_dtype = jnp.float32 if is_v5 else jnp.bfloat16
    bf16_compute = jnp.dtype(compute_dtype) == jnp.dtype(jnp.bfloat16)
    # bias-add + tanh in bf16 only where the VPU/EUP support it (v6e/v7x).
    act_dtype = jnp.bfloat16 if (bf16_compute and not is_v5) else jnp.float32

    if isinstance(act_idx, int):
        assert 0 <= act_idx < act_dim, f"act_idx {act_idx} out of range [0, {act_dim})"
    a = jnp.asarray(act_idx, jnp.int32)

    # Hoist the action selection out of the last matmul: keep only column `a`
    # of W3 and its bias.
    # TODO(synk): lax.dynamic_slice clamps a traced out-of-range act_idx instead
    # of raising like torch .select(-1, act); only the static int case asserts.
    w3_col = jax.lax.dynamic_slice(w3, (jnp.int32(0), a), (h2, 1))   # (h2, 1)
    b3_a = jax.lax.dynamic_slice(b3, (jnp.int32(0), a), (1, 1))      # (1, 1)

    # Transposed (tiny) weights so the kernel keeps the batch on the lane axis.
    w1t = w1.T.astype(compute_dtype)       # (h1, obs_dim)
    w2t = w2.T.astype(compute_dtype)       # (h2, h1)
    w3r = w3_col.T.astype(compute_dtype)   # (1, h2)
    b1t = b1.T.astype(jnp.float32)         # (h1, 1)  -- bias added to f32 accum
    b2t = b2.T.astype(jnp.float32)         # (h2, 1)
    b3_a = b3_a.astype(jnp.float32)        # (1, 1)

    b_tile = _pick_batch_tile(B)
    grid = (pl.cdiv(B, b_tile),)           # partial last tile handled by Pallas

    def resident_spec(arr):
        # Constant block index -> stays resident in VMEM across all grid steps.
        shape = arr.shape
        return pl.BlockSpec(shape, lambda i, _nd=len(shape): (0,) * _nd)

    weight_bytes = sum(int(p.size) * p.dtype.itemsize
                       for p in (w1t, b1t, w2t, b2t, w3r, b3_a))
    cost = pl.CostEstimate(
        flops=2 * B * (obs_dim * h1 + h1 * h2 + h2),
        transcendentals=B * (h1 + h2),
        bytes_accessed=B * obs_dim * obs.dtype.itemsize + B * 4 + weight_bytes,
    )

    out = pl.pallas_call(
        functools.partial(_critic_kernel, act_dtype=act_dtype),
        out_shape=jax.ShapeDtypeStruct((1, B), jnp.float32),
        grid=grid,
        in_specs=[
            pl.BlockSpec((b_tile, obs_dim), lambda i: (i, 0)),  # native obs layout
            resident_spec(w1t), resident_spec(b1t),
            resident_spec(w2t), resident_spec(b2t),
            resident_spec(w3r), resident_spec(b3_a),
        ],
        out_specs=pl.BlockSpec((1, b_tile), lambda i: (0, i)),  # lane-dense output
        compiler_params=pltpu.CompilerParams(
            dimension_semantics=("parallel",)),   # batch tiles shard across TCs
        cost_estimate=cost,
    )(obs, w1t, b1t, w2t, b2t, w3r, b3_a)

    return out[0]


def init_params(key, obs_dim, hidden_sizes, act_dim):
    """Deterministic synthetic init (shapes match the module's nn.Linear layers),
    stored as (in, out) so x @ W + b == PyTorch's x @ W.T + b."""
    sizes = [obs_dim] + list(hidden_sizes) + [act_dim]
    params = {}
    ks = jax.random.split(key, len(sizes) - 1)
    for j in range(len(sizes) - 1):
        fan_in, fan_out = sizes[j], sizes[j + 1]
        bound = 1.0 / jnp.sqrt(fan_in)
        kw, kb = jax.random.split(ks[j])
        params[f"w{j + 1}"] = jax.random.uniform(
            kw, (fan_in, fan_out), jnp.float32, -bound, bound)
        params[f"b{j + 1}"] = jax.random.uniform(
            kb, (1, fan_out), jnp.float32, -bound, bound)
    return params


def _reference(obs, act_idx, params):
    h1 = jnp.tanh(obs @ params["w1"] + params["b1"])
    h2 = jnp.tanh(h1 @ params["w2"] + params["b2"])
    q = h2 @ params["w3"] + params["b3"]
    return q[:, act_idx]


if __name__ == "__main__":
    key = jax.random.PRNGKey(0)
    k_obs, k_obs2, k_par = jax.random.split(key, 3)

    obs_dim, hidden_sizes, act_dim = 16, (32, 32), 8
    params = init_params(k_par, obs_dim, hidden_sizes, act_dim)
    act_idx = 3  # scalar action index (torch .select(-1, act))

    # Small batch: single resident block (grid=(1,)), strict f32 check.
    obs = jax.random.normal(k_obs, (8, obs_dim), jnp.float32)
    out = jax.block_until_ready(
        mlp_discrete_critic_forward(obs, act_idx, params, compute_dtype=jnp.float32))
    ref = _reference(obs, act_idx, params)
    assert out.shape == (8,)
    assert jnp.allclose(out, ref, atol=1e-5, rtol=1e-5), (out, ref)

    # Larger batch: exercises balanced lane-aligned tiling with a ragged last
    # tile (1500 -> two 768-row tiles, no wrapper-side transpose or pad).
    obs_big = jax.random.normal(k_obs2, (1500, obs_dim), jnp.float32)
    out_big = jax.block_until_ready(
        mlp_discrete_critic_forward(obs_big, act_idx, params,
                                    compute_dtype=jnp.float32))
    ref_big = _reference(obs_big, act_idx, params)
    assert out_big.shape == (1500,)
    assert jnp.allclose(out_big, ref_big, atol=1e-4, rtol=1e-4), (out_big, ref_big)

    # Default (auto) dtype path: bf16 matmul inputs + bf16 tanh on v6e/v7x,
    # f32 on v5e -- loose tolerance covers both.
    out_auto = jax.block_until_ready(
        mlp_discrete_critic_forward(obs_big, act_idx, params))
    assert jnp.allclose(out_auto, ref_big, atol=1e-1, rtol=5e-2), (out_auto, ref_big)

    # Explicit bf16 compute path.
    out_bf16 = jax.block_until_ready(
        mlp_discrete_critic_forward(obs_big, act_idx, params,
                                    compute_dtype=jnp.bfloat16))
    assert jnp.allclose(out_bf16, ref_big, atol=1e-1, rtol=5e-2), (out_bf16, ref_big)

    print("KERNEL_OK")
</pallas_src>

<mosaic_0001>
module attributes {stable_mosaic.version = 11 : i64} {
  func.func @_critic_kernel(%arg0: i32, %arg1: memref<8x16xf32, #tpu.memory_space<vmem>>, %arg2: memref<32x16xf32, #tpu.memory_space<vmem>>, %arg3: memref<32x1xf32, #tpu.memory_space<vmem>>, %arg4: memref<32x32xf32, #tpu.memory_space<vmem>>, %arg5: memref<32x1xf32, #tpu.memory_space<vmem>>, %arg6: memref<1x32xf32, #tpu.memory_space<vmem>>, %arg7: memref<1x1xf32, #tpu.memory_space<vmem>>, %arg8: memref<1x8xf32, #tpu.memory_space<vmem>>) attributes {dimension_semantics = [#tpu.dimension_semantics<parallel>], iteration_bounds = array<i64: 1>, scalar_prefetch = 0 : i64, scratch_operands = 0 : i64, tpu.core_type = #tpu.core_type<tc>, window_params = [{transform_indices = @transform_0, window_bounds = array<i64: 8, 16>}, {pipeline_mode = #tpu.pipeline_mode<synchronous>, transform_indices = @transform_1, window_bounds = array<i64: 32, 16>}, {pipeline_mode = #tpu.pipeline_mode<synchronous>, transform_indices = @transform_2, window_bounds = array<i64: 32, 1>}, {pipeline_mode = #tpu.pipeline_mode<synchronous>, transform_indices = @transform_3, window_bounds = array<i64: 32, 32>}, {pipeline_mode = #tpu.pipeline_mode<synchronous>, transform_indices = @transform_4, window_bounds = array<i64: 32, 1>}, {pipeline_mode = #tpu.pipeline_mode<synchronous>, transform_indices = @transform_5, window_bounds = array<i64: 1, 32>}, {pipeline_mode = #tpu.pipeline_mode<synchronous>, transform_indices = @transform_6, window_bounds = array<i64: 1, 1>}, {transform_indices = @transform_7, window_bounds = array<i64: 1, 8>}]} {
    %c0 = arith.constant 0 : index
    %c0_0 = arith.constant 0 : index
    %0 = vector.load %arg1[%c0, %c0_0] : memref<8x16xf32, #tpu.memory_space<vmem>>, vector<8x16xf32>
    %c0_1 = arith.constant 0 : index
    %c0_2 = arith.constant 0 : index
    %1 = vector.load %arg2[%c0_1, %c0_2] : memref<32x16xf32, #tpu.memory_space<vmem>>, vector<32x16xf32>
    %cst = arith.constant dense<0.000000e+00> : vector<32x8xf32>
    %2 = tpu.matmul %1, %0, %cst {dimension_numbers = #tpu.dot_dimension_numbers<[1], [1], [0], [0], [0, 0, 1, 0], [], []>} : vector<32x16xf32>, vector<8x16xf32>, vector<32x8xf32> -> vector<32x8xf32>
    %c0_3 = arith.constant 0 : index
    %c0_4 = arith.constant 0 : index
    %3 = vector.load %arg3[%c0_3, %c0_4] : memref<32x1xf32, #tpu.memory_space<vmem>>, vector<32x1xf32>
    %4 = vector.broadcast %3 : vector<32x1xf32> to vector<32x8xf32>
    %5 = arith.addf %2, %4 : vector<32x8xf32>
    %6 = math.tanh %5 : vector<32x8xf32>
    %c0_5 = arith.constant 0 : index
    %c0_6 = arith.constant 0 : index
    %7 = vector.load %arg4[%c0_5, %c0_6] : memref<32x32xf32, #tpu.memory_space<vmem>>, vector<32x32xf32>
    %cst_7 = arith.constant dense<0.000000e+00> : vector<32x8xf32>
    %8 = tpu.matmul %7, %6, %cst_7 {dimension_numbers = #tpu.dot_dimension_numbers<[1], [0], [0], [1], [0, 0, 1, 1], [], []>} : vector<32x32xf32>, vector<32x8xf32>, vector<32x8xf32> -> vector<32x8xf32>
    %c0_8 = arith.constant 0 : index
    %c0_9 = arith.constant 0 : index
    %9 = vector.load %arg5[%c0_8, %c0_9] : memref<32x1xf32, #tpu.memory_space<vmem>>, vector<32x1xf32>
    %10 = vector.broadcast %9 : vector<32x1xf32> to vector<32x8xf32>
    %11 = arith.addf %8, %10 : vector<32x8xf32>
    %12 = math.tanh %11 : vector<32x8xf32>
    %c0_10 = arith.constant 0 : index
    %c0_11 = arith.constant 0 : index
    %13 = vector.load %arg6[%c0_10, %c0_11] : memref<1x32xf32, #tpu.memory_space<vmem>>, vector<1x32xf32>
    %cst_12 = arith.constant dense<0.000000e+00> : vector<1x8xf32>
    %14 = tpu.matmul %13, %12, %cst_12 {dimension_numbers = #tpu.dot_dimension_numbers<[1], [0], [0], [1], [0, 0, 1, 1], [], []>} : vector<1x32xf32>, vector<32x8xf32>, vector<1x8xf32> -> vector<1x8xf32>
    %c0_13 = arith.constant 0 : index
    %c0_14 = arith.constant 0 : index
    %15 = vector.load %arg7[%c0_13, %c0_14] : memref<1x1xf32, #tpu.memory_space<vmem>>, vector<1x1xf32>
    %16 = vector.broadcast %15 : vector<1x1xf32> to vector<1x8xf32>
    %17 = arith.addf %14, %16 : vector<1x8xf32>
    %c0_15 = arith.constant 0 : index
    %c0_16 = arith.constant 0 : index
    %18 = vector.load %arg8[%c0_15, %c0_16] : memref<1x8xf32, #tpu.memory_space<vmem>>, vector<1x8xf32>
    tpu.vector_store %arg8[%c0_15, %c0_16], %17 {strides = array<i32>} : memref<1x8xf32, #tpu.memory_space<vmem>>, vector<1x8xf32>,
    return
  }
  func.func @transform_0(%arg0: i32) -> (i32, i32) {
    %c0_i32 = arith.constant 0 : i32
    %c0_i32_0 = arith.constant 0 : i32
    return %arg0, %c0_i32 : i32, i32
  }
  func.func @transform_1(%arg0: i32) -> (i32, i32) {
    %c0_i32 = arith.constant 0 : i32
    %c0_i32_0 = arith.constant 0 : i32
    %c0_i32_1 = arith.constant 0 : i32
    return %c0_i32, %c0_i32_0 : i32, i32
  }
  func.func @transform_2(%arg0: i32) -> (i32, i32) {
    %c0_i32 = arith.constant 0 : i32
    %c0_i32_0 = arith.constant 0 : i32
    %c0_i32_1 = arith.constant 0 : i32
    return %c0_i32, %c0_i32_0 : i32, i32
  }
  func.func @transform_3(%arg0: i32) -> (i32, i32) {
    %c0_i32 = arith.constant 0 : i32
    %c0_i32_0 = arith.constant 0 : i32
    %c0_i32_1 = arith.constant 0 : i32
    return %c0_i32, %c0_i32_0 : i32, i32
  }
  func.func @transform_4(%arg0: i32) -> (i32, i32) {
    %c0_i32 = arith.constant 0 : i32
    %c0_i32_0 = arith.constant 0 : i32
    %c0_i32_1 = arith.constant 0 : i32
    return %c0_i32, %c0_i32_0 : i32, i32
  }
  func.func @transform_5(%arg0: i32) -> (i32, i32) {
    %c0_i32 = arith.constant 0 : i32
    %c0_i32_0 = arith.constant 0 : i32
    %c0_i32_1 = arith.constant 0 : i32
    return %c0_i32, %c0_i32_0 : i32, i32
  }
  func.func @transform_6(%arg0: i32) -> (i32, i32) {
    %c0_i32 = arith.constant 0 : i32
    %c0_i32_0 = arith.constant 0 : i32
    %c0_i32_1 = arith.constant 0 : i32
    return %c0_i32, %c0_i32_0 : i32, i32
  }
  func.func @transform_7(%arg0: i32) -> (i32, i32) {
    %c0_i32 = arith.constant 0 : i32
    %c0_i32_0 = arith.constant 0 : i32
    return %c0_i32, %arg0 : i32, i32
  }
}

</mosaic_0001>

<llo_original>
// kernel: tpu_custom_call.1
$region0: #{tpu_custom_call.1}
  #allocation0 [shape = 'u32[]', space=smem, size = 0x4, offset = 0x4, fixed_abs, tag = 'smem constant byte address 0x4 - core index']
  #allocation1 [shape = 'u32[144,128]{1,0:T(1,128)}', space=vmem, size = 0x12000, scoped, tag = 'internal scratch']
  #allocation2 [shape = 'f32[1,1]{1,0:T(1,128)S(1)}', space=vmem, size = 0x200, scoped, tag = 'scoped memory for tpu_custom_call.1']
  %s0 = inlined_call_operand.vmem [shape: f32[8,16], index: 0, kind: input, shape index: {}]
  %s1 = inlined_call_operand.vmem [shape: f32[32,16], index: 1, kind: input, shape index: {}]
  %s2 = inlined_call_operand.vmem [shape: f32[32,1], index: 2, kind: input, shape index: {}]
  %s3 = inlined_call_operand.vmem [shape: f32[32,32], index: 3, kind: input, shape index: {}]
  %s4 = inlined_call_operand.vmem [shape: f32[32,1], index: 4, kind: input, shape index: {}]
  %s5 = inlined_call_operand.vmem [shape: f32[1,32], index: 5, kind: input, shape index: {}]
  %s6 = inlined_call_operand.<no memory space> [shape: f32[1,1], index: 6, kind: input, shape index: {}]
  %s7 = inlined_call_operand.hbm [shape: f32[1,8], index: 7, kind: output, shape index: {}]
  %s8 = sld [smem:[#allocation0]]
  $region38: #{tpu_custom_call.1} parent=0
    _
  %s10 = ssub.s32 1, %s8
  %s11 = scalar_select 0, %s10, %s8
  %v12 = vstv %s6
  %13 = vst [vmem:[#allocation2] sm:$0x1] %v12
  $region1: #{tpu_custom_call.1} parent=0
    #allocation3 [shape = 'u8[512]{0}', space=vmem, size = 0x400, scoped, tag = 'output window, operand 0, single buffered']
    #allocation4 [shape = 's32[1]{0}', space=sflag, size = 0x4, scoped, tag = 'scoped memory for tpu_custom_call.1']
    %14 = vsyncpa [#allocation4], 0
    // Predicated region
    $region2: #{tpu_custom_call.1} parent=1 // pred_check
      _
    $region3: #{tpu_custom_call.1} parent=1 // pred_check_branch
      %16 = sbr.rel (0) target = $region5
    $region4: #{tpu_custom_call.1} parent=1 // pred_region
      _
    $region5: #{tpu_custom_call.1} parent=1 // pred_fallthru
      _
    // Predicated region
    $region6: #{tpu_custom_call.1} parent=1 // pred_check
      _
    $region7: #{tpu_custom_call.1} parent=1 // pred_check_branch
      %18 = sbr.rel (0) target = $region9
    $region8: #{tpu_custom_call.1} parent=1 // pred_region
      _
    $region9: #{tpu_custom_call.1} parent=1 // pred_fallthru
      _
    // Predicated region
    $region10: #{tpu_custom_call.1} parent=1 // pred_check
      _
    $region11: #{tpu_custom_call.1} parent=1 // pred_check_branch
      %20 = sbr.rel (0) target = $region13
    $region12: #{tpu_custom_call.1} parent=1 // pred_region
      _
    $region13: #{tpu_custom_call.1} parent=1 // pred_fallthru
      _
    // Predicated region
    $region14: #{tpu_custom_call.1} parent=1 // pred_check
      _
    $region15: #{tpu_custom_call.1} parent=1 // pred_check_branch
      %22 = sbr.rel (0) target = $region17
    $region16: #{tpu_custom_call.1} parent=1 // pred_region
      _
    $region17: #{tpu_custom_call.1} parent=1 // pred_fallthru
      _
    // Predicated region
    $region18: #{tpu_custom_call.1} parent=1 // pred_check
      _
    $region19: #{tpu_custom_call.1} parent=1 // pred_check_branch
      %24 = sbr.rel (0) target = $region21
    $region20: #{tpu_custom_call.1} parent=1 // pred_region
      _
    $region21: #{tpu_custom_call.1} parent=1 // pred_fallthru
      _
    // Predicated region
    $region22: #{tpu_custom_call.1} parent=1 // pred_check
      _
    $region23: #{tpu_custom_call.1} parent=1 // pred_check_branch
      %26 = sbr.rel (0) target = $region25
    $region24: #{tpu_custom_call.1} parent=1 // pred_region
      _
    $region25: #{tpu_custom_call.1} parent=1 // pred_fallthru
      _
    // Predicated region
    $region26: #{tpu_custom_call.1} parent=1 // pred_check
      _
    $region27: #{tpu_custom_call.1} parent=1 // pred_check_branch
      %28 = sbr.rel (0) target = $region29
    $region28: #{tpu_custom_call.1} parent=1 // pred_region
      _
    $region29: #{tpu_custom_call.1} parent=1 // pred_fallthru
      _
    %v29 = vld [vmem:[%s0] sm:$0xff]
    %v30 = vld [vmem:[%s1] sm:$0xff]
    %v31 = vld [vmem:[%s1 + $0x8] sm:$0xff]
    %v32 = vld [vmem:[%s1 + $0x10] sm:$0xff]
    %v33 = vld [vmem:[%s1 + $0x18] sm:$0xff]
    %v34 = vld [vmem:[%s2] sm:$0xff]
    %v35 = vld [vmem:[%s2 + $0x8] sm:$0xff]
    %v36 = vld [vmem:[%s2 + $0x10] sm:$0xff]
    %v37 = vld [vmem:[%s2 + $0x18] sm:$0xff]
    %39 = vset.pattern.permute.xlu0 0
    %40 = vperm.xlu0 %39, %v34
    %v41 = vpop.permute.xlu0 %40
    %44 = vset.pattern.permute.xlu0 0
    %45 = vperm.xlu0 %44, %v35
    %v46 = vpop.permute.xlu0 %45
    %49 = vset.pattern.permute.xlu0 0
    %50 = vperm.xlu0 %49, %v36
    %v51 = vpop.permute.xlu0 %50
    %54 = vset.pattern.permute.xlu0 0
    %55 = vperm.xlu0 %54, %v37
    %v56 = vpop.permute.xlu0 %55
    %vm58 = vcmask 130048
    %v60 = vsel %vm58, %v30, 0
    %v63 = vsel %vm58, %v31, 0
    %v66 = vsel %vm58, %v32, 0
    %v69 = vsel %vm58, %v33, 0
    %v72 = vsel %vm58, %v29, 0
    %74 = vmatprep.subr.mxu0 0.0
    %75 = vmatpush1.xpose.msra.mxu0 0.0
    %76 = vmatprep.subr.mxu0 0.0
    %77 = vmatpush1.xpose.msra.mxu0 0.0
    %78 = vmatprep.subr.mxu0 0.0
    %79 = vmatpush1.xpose.msra.mxu0 0.0
    %80 = vmatprep.subr.mxu0 0.0
    %81 = vmatpush1.xpose.msra.mxu0 0.0
    %82 = vmatprep.subr.mxu0 0.0
    %83 = vmatpush1.xpose.msra.mxu0 0.0
    %84 = vmatprep.subr.mxu0 0.0
    %85 = vmatpush1.xpose.msra.mxu0 0.0
    %86 = vmatprep.subr.mxu0 0.0
    %87 = vmatpush1.xpose.msra.mxu0 0.0
    %88 = vmatprep.subr.mxu0 0.0
    %89 = vmatpush1.xpose.msra.mxu0 0.0
    %90 = vmatprep.subr.mxu0 0.0
    %91 = vmatpush1.xpose.msra.mxu0 0.0
    %92 = vmatprep.subr.mxu0 0.0
    %93 = vmatpush1.xpose.msra.mxu0 0.0
    %94 = vmatprep.subr.mxu0 0.0
    %95 = vmatpush1.xpose.msra.mxu0 0.0
    %96 = vmatprep.subr.mxu0 0.0
    %97 = vmatpush1.xpose.msra.mxu0 0.0
    %98 = vmatprep.subr.mxu0 0.0
    %99 = vmatpush1.xpose.msra.mxu0 0.0
    %100 = vmatprep.subr.mxu0 0.0
    %101 = vmatpush1.xpose.msra.mxu0 0.0
    %102 = vmatprep.subr.mxu0 0.0
    %103 = vmatpush1.xpose.msra.mxu0 0.0
    %104 = vmatprep.subr.mxu0 0.0
    %105 = vmatpush1.xpose.msra.mxu0 %v72
    %106 = vmatprep.subr.mxu0 0.0
    %107 = vmatpush2.xpose.msra.mxu0 0.0
    %108 = vmatprep.subr.mxu0 0.0
    %109 = vmatpush2.xpose.msra.mxu0 0.0
    %110 = vmatprep.subr.mxu0 0.0
    %111 = vmatpush2.xpose.msra.mxu0 0.0
    %112 = vmatprep.subr.mxu0 0.0
    %113 = vmatpush2.xpose.msra.mxu0 0.0
    %114 = vmatprep.subr.mxu0 0.0
    %115 = vmatpush2.xpose.msra.mxu0 0.0
    %116 = vmatprep.subr.mxu0 0.0
    %117 = vmatpush2.xpose.msra.mxu0 0.0
    %118 = vmatprep.subr.mxu0 0.0
    %119 = vmatpush2.xpose.msra.mxu0 0.0
    %120 = vmatprep.subr.mxu0 0.0
    %121 = vmatpush2.xpose.msra.mxu0 0.0
    %122 = vmatprep.subr.mxu0 0.0
    %123 = vmatpush2.xpose.msra.mxu0 0.0
    %124 = vmatprep.subr.mxu0 0.0
    %125 = vmatpush2.xpose.msra.mxu0 0.0
    %126 = vmatprep.subr.mxu0 0.0
    %127 = vmatpush2.xpose.msra.mxu0 0.0
    %128 = vmatprep.subr.mxu0 0.0
    %129 = vmatpush2.xpose.msra.mxu0 0.0
    %130 = vmatprep.subr.mxu0 0.0
    %131 = vmatpush2.xpose.msra.mxu0 0.0
    %132 = vmatprep.subr.mxu0 0.0
    %133 = vmatpush2.xpose.msra.mxu0 0.0
    %134 = vmatprep.subr.mxu0 0.0
    %135 = vmatpush2.xpose.msra.mxu0 0.0
    %136 = vmatprep.subr.mxu0 0.0
    %137 = vmatpush2.xpose.msra.mxu0 0.0
    %138 = vmatprep.mubr.f32.mxu0 0.0
    %139 = vmatmul.mubr.f32.gmra.mxu0 %v60
    %v140 = vpop.f32.mrf.mxu0
    %v141 = vadd.f32 %v41, %v140
    %v142 = vpop.f32.mrf.mxu0
    %143 = vmatprep.mubr.f32.mxu0 0.0
    %144 = vmatmul.mubr.f32.gmra.mxu0 %v63
    %v145 = vpop.f32.mrf.mxu0
    %v146 = vadd.f32 %v46, %v145
    %v147 = vpop.f32.mrf.mxu0
    %148 = vmatprep.mubr.f32.mxu0 0.0
    %149 = vmatmul.mubr.f32.gmra.mxu0 %v66
    %v150 = vpop.f32.mrf.mxu0
    %v151 = vadd.f32 %v51, %v150
    %v152 = vpop.f32.mrf.mxu0
    %153 = vmatprep.mubr.f32.mxu0 0.0
    %154 = vmatmul.mubr.f32.gmra.mxu0 %v69
    %v155 = vpop.f32.mrf.mxu0
    %v156 = vadd.f32 %v56, %v155
    %v157 = vpop.f32.mrf.mxu0
    %158 = vdwg.mxu0
    %v159 = vtanh.pop %v141
    %v160 = vtanh.pop %v146
    %v161 = vtanh.pop %v151
    %v162 = vtanh.pop %v156
    %v163 = vld [vmem:[%s3] sm:$0xff]
    %v164 = vld [vmem:[%s3 + $0x8] sm:$0xff]
    %v165 = vld [vmem:[%s3 + $0x10] sm:$0xff]
    %v166 = vld [vmem:[%s3 + $0x18] sm:$0xff]
    %v167 = vld [vmem:[%s4] sm:$0xff]
    %v168 = vld [vmem:[%s4 + $0x8] sm:$0xff]
    %v169 = vld [vmem:[%s4 + $0x10] sm:$0xff]
    %v170 = vld [vmem:[%s4 + $0x18] sm:$0xff]
    %172 = vset.pattern.permute.xlu0 0
    %173 = vperm.xlu0 %172, %v167
    %v174 = vpop.permute.xlu0 %173
    %177 = vset.pattern.permute.xlu0 0
    %178 = vperm.xlu0 %177, %v168
    %v179 = vpop.permute.xlu0 %178
    %182 = vset.pattern.permute.xlu0 0
    %183 = vperm.xlu0 %182, %v169
    %v184 = vpop.permute.xlu0 %183
    %187 = vset.pattern.permute.xlu0 0
    %188 = vperm.xlu0 %187, %v170
    %v189 = vpop.permute.xlu0 %188
    %vm191 = vcmask 261120
    %v193 = vsel %vm191, %v163, 0
    %v196 = vsel %vm191, %v164, 0
    %v199 = vsel %vm191, %v165, 0
    %v202 = vsel %vm191, %v166, 0
    %204 = vmatprep.subr.mxu0 0.0
    %205 = vmatpush1.msra.mxu0 0.0
    %206 = vmatprep.subr.mxu0 0.0
    %207 = vmatpush1.msra.mxu0 0.0
    %208 = vmatprep.subr.mxu0 0.0
    %209 = vmatpush1.msra.mxu0 0.0
    %210 = vmatprep.subr.mxu0 0.0
    %211 = vmatpush1.msra.mxu0 0.0
    %212 = vmatprep.subr.mxu0 0.0
    %213 = vmatpush1.msra.mxu0 0.0
    %214 = vmatprep.subr.mxu0 0.0
    %215 = vmatpush1.msra.mxu0 0.0
    %216 = vmatprep.subr.mxu0 0.0
    %217 = vmatpush1.msra.mxu0 0.0
    %218 = vmatprep.subr.mxu0 0.0
    %219 = vmatpush1.msra.mxu0 0.0
    %220 = vmatprep.subr.mxu0 0.0
    %221 = vmatpush1.msra.mxu0 0.0
    %222 = vmatprep.subr.mxu0 0.0
    %223 = vmatpush1.msra.mxu0 0.0
    %224 = vmatprep.subr.mxu0 0.0
    %225 = vmatpush1.msra.mxu0 0.0
    %226 = vmatprep.subr.mxu0 0.0
    %227 = vmatpush1.msra.mxu0 0.0
    %228 = vmatprep.subr.mxu0 0.0
    %229 = vmatpush1.msra.mxu0 %v162
    %230 = vmatprep.subr.mxu0 0.0
    %231 = vmatpush1.msra.mxu0 %v161
    %232 = vmatprep.subr.mxu0 0.0
    %233 = vmatpush1.msra.mxu0 %v160
    %234 = vmatprep.subr.mxu0 0.0
    %235 = vmatpush1.msra.mxu0 %v159
    %236 = vmatprep.subr.mxu0 0.0
    %237 = vmatpush2.msra.mxu0 0.0
    %238 = vmatprep.subr.mxu0 0.0
    %239 = vmatpush2.msra.mxu0 0.0
    %240 = vmatprep.subr.mxu0 0.0
    %241 = vmatpush2.msra.mxu0 0.0
    %242 = vmatprep.subr.mxu0 0.0
    %243 = vmatpush2.msra.mxu0 0.0
    %244 = vmatprep.subr.mxu0 0.0
    %245 = vmatpush2.msra.mxu0 0.0
    %246 = vmatprep.subr.mxu0 0.0
    %247 = vmatpush2.msra.mxu0 0.0
    %248 = vmatprep.subr.mxu0 0.0
    %249 = vmatpush2.msra.mxu0 0.0
    %250 = vmatprep.subr.mxu0 0.0
    %251 = vmatpush2.msra.mxu0 0.0
    %252 = vmatprep.subr.mxu0 0.0
    %253 = vmatpush2.msra.mxu0 0.0
    %254 = vmatprep.subr.mxu0 0.0
    %255 = vmatpush2.msra.mxu0 0.0
    %256 = vmatprep.subr.mxu0 0.0
    %257 = vmatpush2.msra.mxu0 0.0
    %258 = vmatprep.subr.mxu0 0.0
    %259 = vmatpush2.msra.mxu0 0.0
    %260 = vmatprep.subr.mxu0 0.0
    %261 = vmatpush2.msra.mxu0 0.0
    %262 = vmatprep.subr.mxu0 0.0
    %263 = vmatpush2.msra.mxu0 0.0
    %264 = vmatprep.subr.mxu0 0.0
    %265 = vmatpush2.msra.mxu0 0.0
    %266 = vmatprep.subr.mxu0 0.0
    %267 = vmatpush2.msra.mxu0 0.0
    %268 = vmatprep.mubr.f32.mxu0 0.0
    %269 = vmatmul.mubr.f32.gmra.mxu0 %v193
    %v270 = vpop.f32.mrf.mxu0
    %v271 = vadd.f32 %v174, %v270
    %v272 = vpop.f32.mrf.mxu0
    %273 = vmatprep.mubr.f32.mxu0 0.0
    %274 = vmatmul.mubr.f32.gmra.mxu0 %v196
    %v275 = vpop.f32.mrf.mxu0
    %v276 = vadd.f32 %v179, %v275
    %v277 = vpop.f32.mrf.mxu0
    %278 = vmatprep.mubr.f32.mxu0 0.0
    %279 = vmatmul.mubr.f32.gmra.mxu0 %v199
    %v280 = vpop.f32.mrf.mxu0
    %v281 = vadd.f32 %v184, %v280
    %v282 = vpop.f32.mrf.mxu0
    %283 = vmatprep.mubr.f32.mxu0 0.0
    %284 = vmatmul.mubr.f32.gmra.mxu0 %v202
    %v285 = vpop.f32.mrf.mxu0
    %v286 = vadd.f32 %v189, %v285
    %v287 = vpop.f32.mrf.mxu0
    %288 = vdwg.mxu0
    %v289 = vtanh.pop %v271
    %v290 = vtanh.pop %v276
    %v291 = vtanh.pop %v281
    %v292 = vtanh.pop %v286
    %v293 = vld [vmem:[%s5] sm:$0x1]
    %v294 = vld [vmem:[#allocation2] sm:$0x1]
    %296 = vset.pattern.permute.xlu0 0
    %297 = vperm.xlu0 %296, %v294
    %v298 = vpop.permute.xlu0 %297
    %v300 = vlaneseq
    %v301 = vshrl.u32 %v300, 7
    %v302 = vsub.s32 0, %v301
    %v303 = vrot.slane %v298, %v302
    %v305 = vsel %vm191, %v293, 0
    %307 = vmatprep.subr.mxu0 0.0
    %308 = vmatpush1.msra.mxu0 0.0
    %309 = vmatprep.subr.mxu0 0.0
    %310 = vmatpush1.msra.mxu0 0.0
    %311 = vmatprep.subr.mxu0 0.0
    %312 = vmatpush1.msra.mxu0 0.0
    %313 = vmatprep.subr.mxu0 0.0
    %314 = vmatpush1.msra.mxu0 0.0
    %315 = vmatprep.subr.mxu0 0.0
    %316 = vmatpush1.msra.mxu0 0.0
    %317 = vmatprep.subr.mxu0 0.0
    %318 = vmatpush1.msra.mxu0 0.0
    %319 = vmatprep.subr.mxu0 0.0
    %320 = vmatpush1.msra.mxu0 0.0
    %321 = vmatprep.subr.mxu0 0.0
    %322 = vmatpush1.msra.mxu0 0.0
    %323 = vmatprep.subr.mxu0 0.0
    %324 = vmatpush1.msra.mxu0 0.0
    %325 = vmatprep.subr.mxu0 0.0
    %326 = vmatpush1.msra.mxu0 0.0
    %327 = vmatprep.subr.mxu0 0.0
    %328 = vmatpush1.msra.mxu0 0.0
    %329 = vmatprep.subr.mxu0 0.0
    %330 = vmatpush1.msra.mxu0 0.0
    %331 = vmatprep.subr.mxu0 0.0
    %332 = vmatpush1.msra.mxu0 %v292
    %333 = vmatprep.subr.mxu0 0.0
    %334 = vmatpush1.msra.mxu0 %v291
    %335 = vmatprep.subr.mxu0 0.0
    %336 = vmatpush1.msra.mxu0 %v290
    %337 = vmatprep.subr.mxu0 0.0
    %338 = vmatpush1.msra.mxu0 %v289
    %339 = vmatprep.subr.mxu0 0.0
    %340 = vmatpush2.msra.mxu0 0.0
    %341 = vmatprep.subr.mxu0 0.0
    %342 = vmatpush2.msra.mxu0 0.0
    %343 = vmatprep.subr.mxu0 0.0
    %344 = vmatpush2.msra.mxu0 0.0
    %345 = vmatprep.subr.mxu0 0.0
    %346 = vmatpush2.msra.mxu0 0.0
    %347 = vmatprep.subr.mxu0 0.0
    %348 = vmatpush2.msra.mxu0 0.0
    %349 = vmatprep.subr.mxu0 0.0
    %350 = vmatpush2.msra.mxu0 0.0
    %351 = vmatprep.subr.mxu0 0.0
    %352 = vmatpush2.msra.mxu0 0.0
    %353 = vmatprep.subr.mxu0 0.0
    %354 = vmatpush2.msra.mxu0 0.0
    %355 = vmatprep.subr.mxu0 0.0
    %356 = vmatpush2.msra.mxu0 0.0
    %357 = vmatprep.subr.mxu0 0.0
    %358 = vmatpush2.msra.mxu0 0.0
    %359 = vmatprep.subr.mxu0 0.0
    %360 = vmatpush2.msra.mxu0 0.0
    %361 = vmatprep.subr.mxu0 0.0
    %362 = vmatpush2.msra.mxu0 0.0
    %363 = vmatprep.subr.mxu0 0.0
    %364 = vmatpush2.msra.mxu0 0.0
    %365 = vmatprep.subr.mxu0 0.0
    %366 = vmatpush2.msra.mxu0 0.0
    %367 = vmatprep.subr.mxu0 0.0
    %368 = vmatpush2.msra.mxu0 0.0
    %369 = vmatprep.subr.mxu0 0.0
    %370 = vmatpush2.msra.mxu0 0.0
    %371 = vmatprep.mubr.f32.mxu0 0.0
    %372 = vmatmul.mubr.f32.gmra.mxu0 %v305
    %v373 = vpop.f32.mrf.mxu0
    %v374 = vadd.f32 %v303, %v373
    %v375 = vpop.f32.mrf.mxu0
    %376 = vdwg.mxu0
    %vm377 = vcmask 57344
    %378 = vst.msk [vmem:[#allocation3] sm:$0x1] %vm377, %v374
    // Predicated region
    $region30: #{tpu_custom_call.1} parent=1 // pred_check
      _
    $region31: #{tpu_custom_call.1} parent=1 // pred_check_branch
      %380 = sbr.rel (0) target = $region33
    $region32: #{tpu_custom_call.1} parent=1 // pred_region
      %s382 = ssub.s32 16, 16
      %383 = vsyncadd [#allocation4], %s382
      %s385 = sshll.u32 [#allocation3], 4
      %s386 = int_to_ptr.vmem [resolvable:$true] %s385
      %388 = dma.vmem_to_hbm [thread:$0]  %s386, 16, %s7, [#allocation4]
    $region33: #{tpu_custom_call.1} parent=1 // pred_fallthru
      _
    // Predicated region
    $region34: #{tpu_custom_call.1} parent=1 // pred_check
      _
    $region35: #{tpu_custom_call.1} parent=1 // pred_check_branch
      %390 = sbr.rel (0) target = $region37
    $region36: #{tpu_custom_call.1} parent=1 // pred_region
      %391 = dma.done [#allocation4], 16
    $region37: #{tpu_custom_call.1} parent=1 // pred_fallthru
      _
    %392 = vsyncpa [#allocation4], 1

</llo_original>
